<compile_context>
chip_gen: v5e
topology: v5e:2x2
jax: 0.10.0
libtpu: 0.0.40
codegen_flags: <defaults>
</compile_context>

<pallas_src>
import functools
import random

import numpy as np
import jax
import jax.numpy as jnp
from jax import lax
from jax.experimental import pallas as pl
from jax.experimental.pallas import tpu as pltpu


_MAX_TILE_ROWS = 1024            # DMA sweet spot is 512-1024 rows per tile
_PIPELINE_TILES = 4              # 2 in + 2 out double-buffered pipeline buffers
_TEMP_TILES = 2                  # rolled tile + select result (headroom for Mosaic temps)
_FORCE_SPLIT_BYTES = 2 << 20     # planes above this get >= 2 row tiles (v7x megacore)
_VMEM_FALLBACK_BYTES = 64 << 20  # v7x per-core physical VMEM (smallest across generations)


@functools.lru_cache(maxsize=None)
def _vmem_limit_bytes():
    """Scoped-VMEM limit: 3/4 of the physical per-core VMEM (generation-aware)."""
    try:
        cap = pltpu.get_tpu_info().vmem_capacity_bytes
    except Exception:
        cap = _VMEM_FALLBACK_BYTES
    return int(min(cap * 3 // 4, 96 << 20))


def _sublane_rows(itemsize):
    """Row granularity for packed sublanes: 8 (f32), 16 (bf16), 32 (int8/fp8)."""
    return 8 * max(1, 4 // int(itemsize))


def _pick_row_tile(h, w, itemsize, *, max_tile_rows):
    """Largest sublane-aligned row tile dividing h whose pipeline + temp tiles fit VMEM."""
    sub = _sublane_rows(itemsize)
    if h <= sub:
        return h
    row_bytes = w * itemsize
    budget_rows = max(
        sub, _vmem_limit_bytes() // ((_PIPELINE_TILES + _TEMP_TILES) * row_bytes))
    th = min(h, budget_rows, max_tile_rows)
    th -= th % sub
    while th >= sub:
        if h % th == 0:
            return th
        th -= sub
    return h   # no aligned divisor: full-extent block (block == full dim is legal)


def _max_rows_for_megacore(h, w, itemsize, max_tile_rows):
    """Cap the tile so planes big enough to matter split into >= 2 tiles (v7x's 2 TCs)."""
    if h * w * itemsize < _FORCE_SPLIT_BYTES:
        return max_tile_rows
    sub = _sublane_rows(itemsize)
    half = (h // 2) - ((h // 2) % sub)
    if half < sub:
        return max_tile_rows
    return min(max_tile_rows, half)


def _translate_kernel(move_ref, x_ref, o_ref, *, h_limit, width):
    """Shift one (1, TH, W) row tile of channel 0 horizontally by `move` columns."""
    move = move_ref[0]                                   # traced int32 scalar from SMEM
    x = x_ref[0]                                         # (TH, W) rows in VMEM
    shift = move % width                                 # floor-mod keeps shift in [0, W)
    rolled = pltpu.roll(x, shift, axis=1)                # rolled[:, i] = x[:, (i - shift) % W]
    # Validity depends only on the column index: build it at (1, W) and let jnp.where
    # broadcast it over the row tile (no full-tile int32 iota/compare temporaries).
    col = lax.broadcasted_iota(jnp.int32, (1, width), 1)
    src = col - move
    # Faithful to the torch loop: the bound check is against H == len(img[0]), not W.
    valid = (col < h_limit) & (src >= 0) & (src < h_limit)
    o_ref[0] = jnp.where(valid, rolled, jnp.zeros((), dtype=rolled.dtype)).astype(o_ref.dtype)


def _translate_batch_kernel(move_ref, apply_ref, x_ref, o_ref, *, h_limit, width):
    """Per-image channel-0 shift; images with apply == 0 pass through unchanged."""
    b = pl.program_id(0)
    move = move_ref[b]
    do_apply = apply_ref[b] != 0
    x = x_ref[0, 0]                                      # (TH, W)
    shift = move % width
    rolled = pltpu.roll(x, shift, axis=1)
    col = lax.broadcasted_iota(jnp.int32, (1, width), 1)
    src = col - move
    valid = (col < h_limit) & (src >= 0) & (src < h_limit)
    shifted = jnp.where(valid, rolled, jnp.zeros((), dtype=rolled.dtype)).astype(o_ref.dtype)
    o_ref[0, 0] = jnp.where(do_apply, shifted, x)


def _translate_channel0(img, move_arr, *, max_tile_rows=_MAX_TILE_ROWS):
    """Return img with channel 0 shifted horizontally by `move` columns (zero fill).

    Channels != 0 pass through untouched: the output aliases the input buffer and the
    grid only visits channel-0 row tiles.
    """
    C, H, W = img.shape
    itemsize = img.dtype.itemsize
    max_rows = _max_rows_for_megacore(H, W, itemsize, max_tile_rows)
    th = _pick_row_tile(H, W, itemsize, max_tile_rows=max_rows)
    kern = functools.partial(_translate_kernel, h_limit=H, width=W)
    return pl.pallas_call(
        kern,
        out_shape=jax.ShapeDtypeStruct(img.shape, img.dtype),
        grid=(H // th,),
        in_specs=[
            pl.BlockSpec(memory_space=pltpu.MemorySpace.SMEM),    # move scalar
            pl.BlockSpec((1, th, W), lambda i: (0, i, 0)),        # channel-0 row tile
        ],
        out_specs=pl.BlockSpec((1, th, W), lambda i: (0, i, 0)),
        input_output_aliases={1: 0},                              # update img in place
        compiler_params=pltpu.CompilerParams(
            dimension_semantics=("parallel",),                    # row tiles across 2 TCs
            vmem_limit_bytes=_vmem_limit_bytes()),
    )(move_arr, img)


def _translate_channel0_batch(imgs, moves, applies, *, max_tile_rows=_MAX_TILE_ROWS):
    """Batched variant: one kernel call for (B, C, H, W) with per-image move / apply."""
    B, C, H, W = imgs.shape
    itemsize = imgs.dtype.itemsize
    max_rows = _max_rows_for_megacore(H, W, itemsize, max_tile_rows)
    th = _pick_row_tile(H, W, itemsize, max_tile_rows=max_rows)
    kern = functools.partial(_translate_batch_kernel, h_limit=H, width=W)
    return pl.pallas_call(
        kern,
        out_shape=jax.ShapeDtypeStruct(imgs.shape, imgs.dtype),
        grid=(B, H // th),
        in_specs=[
            pl.BlockSpec(memory_space=pltpu.MemorySpace.SMEM),    # per-image moves (B,)
            pl.BlockSpec(memory_space=pltpu.MemorySpace.SMEM),    # per-image apply flags (B,)
            pl.BlockSpec((1, 1, th, W), lambda b, i: (b, 0, i, 0)),
        ],
        out_specs=pl.BlockSpec((1, 1, th, W), lambda b, i: (b, 0, i, 0)),
        input_output_aliases={2: 0},                              # update batch in place
        compiler_params=pltpu.CompilerParams(
            dimension_semantics=("parallel", "parallel"),
            vmem_limit_bytes=_vmem_limit_bytes()),
    )(moves, applies, imgs)


# One compile per image shape/dtype; `move` is a traced operand and the image buffer is
# donated so the channel-0 update is genuinely in place (no whole-image HBM copy).
_translate_channel0_jit = jax.jit(_translate_channel0, donate_argnums=(0,))
_translate_channel0_batch_jit = jax.jit(_translate_channel0_batch, donate_argnums=(0,))


class TranslateHorizontal:
    """Port of the PyTorch TranslateHorizontal module (deterministically seeded RNG)."""

    def __init__(self, p=0.2, moving=70, seed=0):
        self.p = p
        self.moving = moving
        self._rng = random.Random(seed)   # host-side RNG glue, like the torch module
        self._last_move = None            # recorded for testing only

    def _draw_move(self):
        move = self._rng.randint(5, self.moving)
        if self._rng.random() > 0.5:
            move = -move
        return move

    def __call__(self, img):
        if self._rng.random() > self.p:
            self._last_move = None
            return img
        move = self._draw_move()
        self._last_move = move
        # NOTE: img's device buffer is donated (the torch module mutates in place too);
        # snapshot it first if the original is still needed.
        return _translate_channel0_jit(img, jnp.asarray([move], dtype=jnp.int32))

    def batch_call(self, imgs):
        """Apply the transform independently to each image of a (B, C, H, W) batch in a
        single kernel launch; per-image p-gate and move are drawn on the host."""
        B = imgs.shape[0]
        moves, applies = [], []
        for _ in range(B):
            do_apply = self._rng.random() <= self.p
            applies.append(1 if do_apply else 0)
            moves.append(self._draw_move() if do_apply else 0)
        self._last_batch = (list(moves), list(applies))
        return _translate_channel0_batch_jit(
            imgs,
            jnp.asarray(moves, dtype=jnp.int32),
            jnp.asarray(applies, dtype=jnp.int32))

    def __repr__(self):
        return f"{self.__class__.__name__}(p={self.p})"


def reference_translate(img_np, move):
    """Faithful numpy mirror of the original PyTorch forward loop."""
    out = np.array(img_np, copy=True)
    plane = np.asarray(img_np[0])
    H, W = plane.shape
    new_img = np.zeros((H, W), dtype=plane.dtype)
    for i in range(H):                      # original iterates range(len(img[0])) == H
        src = i - move
        if 0 <= src < H:                    # original bound check uses len(img[0]) == H
            new_img[:, i] = plane[:, int(src)]
    out[0] = new_img
    return out


if __name__ == "__main__":
    module = TranslateHorizontal(p=1.0, moving=20, seed=0)   # p=1 -> kernel path always runs

    # --- test 1: non-square (W > H) multi-channel image, single-tile grid ---------------
    C, H, W = 4, 64, 128
    img = jax.random.normal(jax.random.PRNGKey(0), (C, H, W), dtype=jnp.float32)
    img_np = np.asarray(img)                # host snapshot: the device buffer is donated
    out = jax.block_until_ready(module(img))
    ref = reference_translate(img_np, module._last_move)
    np.testing.assert_allclose(np.asarray(out), ref, rtol=1e-6, atol=1e-6)

    # --- test 2: multi-step row-tiled grid + explicit negative shift (eager, no donate) -
    C2, H2, W2 = 2, 64, 128
    img2 = jax.random.normal(jax.random.PRNGKey(1), (C2, H2, W2), dtype=jnp.float32)
    move2 = -9
    out2 = _translate_channel0(img2, jnp.asarray([move2], dtype=jnp.int32),
                               max_tile_rows=16)             # forces grid=(4,)
    out2 = jax.block_until_ready(out2)
    ref2 = reference_translate(np.asarray(img2), move2)
    np.testing.assert_allclose(np.asarray(out2), ref2, rtol=1e-6, atol=1e-6)

    # --- test 3: batched kernel, one image shifted and one passed through ---------------
    B3, C3, H3, W3 = 2, 3, 32, 128
    imgs3 = jax.random.normal(jax.random.PRNGKey(2), (B3, C3, H3, W3), dtype=jnp.float32)
    imgs3_np = np.asarray(imgs3)            # snapshot: the batch buffer is donated
    moves3 = jnp.asarray([6, -9], dtype=jnp.int32)
    applies3 = jnp.asarray([1, 0], dtype=jnp.int32)          # second image: pass-through
    out3 = jax.block_until_ready(_translate_channel0_batch_jit(imgs3, moves3, applies3))
    ref3 = np.stack([reference_translate(imgs3_np[0], 6), imgs3_np[1]])
    np.testing.assert_allclose(np.asarray(out3), ref3, rtol=1e-6, atol=1e-6)

    print("KERNEL_OK")
</pallas_src>

<mosaic_0001>
module attributes {stable_mosaic.version = 11 : i64} {
  func.func @_translate_kernel(%arg0: i32, %arg1: memref<1xi32, #tpu.memory_space<smem>>, %arg2: memref<1x64x128xf32, #tpu.memory_space<vmem>>, %arg3: memref<1x64x128xf32, #tpu.memory_space<vmem>>) attributes {dimension_semantics = [#tpu.dimension_semantics<parallel>], iteration_bounds = array<i64: 1>, scalar_prefetch = 0 : i64, scratch_operands = 0 : i64, tpu.core_type = #tpu.core_type<tc>, window_params = [{transform_indices = @transform_0, window_bounds = array<i64: 1>}, {transform_indices = @transform_1, window_bounds = array<i64: 1, 64, 128>}, {transform_indices = @transform_2, window_bounds = array<i64: 1, 64, 128>}]} {
    %c0 = arith.constant 0 : index
    %0 = memref.load %arg1[%c0] : memref<1xi32, #tpu.memory_space<smem>>
    %c0_0 = arith.constant 0 : index
    %c0_1 = arith.constant 0 : index
    %c0_2 = arith.constant 0 : index
    %1 = vector.load %arg2[%c0_0, %c0_1, %c0_2] : memref<1x64x128xf32, #tpu.memory_space<vmem>>, vector<1x64x128xf32>
    %2 = vector.shape_cast %1 : vector<1x64x128xf32> to vector<64x128xf32>
    %c128_i32 = arith.constant 128 : i32
    %c0_i32 = arith.constant 0 : i32
    %3 = arith.cmpi eq, %c128_i32, %c0_i32 : i32
    %c1_i32 = arith.constant 1 : i32
    %4 = arith.select %3, %c1_i32, %c128_i32 : i32
    %5 = arith.remsi %0, %4 : i32
    %c0_i32_3 = arith.constant 0 : i32
    %6 = arith.cmpi ne, %5, %c0_i32_3 : i32
    %c0_i32_4 = arith.constant 0 : i32
    %7 = arith.cmpi slt, %5, %c0_i32_4 : i32
    %c0_i32_5 = arith.constant 0 : i32
    %8 = arith.cmpi slt, %4, %c0_i32_5 : i32
    %9 = arith.xori %7, %8 : i1
    %10 = arith.andi %9, %6 : i1
    %11 = arith.addi %5, %4 : i32
    %12 = arith.select %10, %11, %5 : i32
    %13 = tpu.dynamic_rotate %2 by %12 dim 1 : vector<64x128xf32>, i32 -> vector<64x128xf32>
    %14 = tpu.iota {dimensions = array<i32: 1>} : vector<1x128xi32>
    %15 = vector.broadcast %0 : i32 to vector<1x128xi32>
    %16 = arith.subi %14, %15 : vector<1x128xi32>
    %c64_i32 = arith.constant 64 : i32
    %17 = vector.broadcast %c64_i32 : i32 to vector<1x128xi32>
    %18 = arith.cmpi slt, %14, %17 : vector<1x128xi32>
    %c0_i32_6 = arith.constant 0 : i32
    %19 = vector.broadcast %c0_i32_6 : i32 to vector<1x128xi32>
    %20 = arith.cmpi sge, %16, %19 : vector<1x128xi32>
    %21 = arith.andi %18, %20 : vector<1x128xi1>
    %c64_i32_7 = arith.constant 64 : i32
    %22 = vector.broadcast %c64_i32_7 : i32 to vector<1x128xi32>
    %23 = arith.cmpi slt, %16, %22 : vector<1x128xi32>
    %24 = arith.andi %21, %23 : vector<1x128xi1>
    %cst = arith.constant 0.000000e+00 : f32
    %25 = vector.shape_cast %24 : vector<1x128xi1> to vector<1x128xi1>
    %26 = vector.broadcast %25 : vector<1x128xi1> to vector<64x128xi1>
    %27 = vector.broadcast %cst : f32 to vector<64x128xf32>
    %28 = arith.select %26, %13, %27 : vector<64x128xi1>, vector<64x128xf32>
    %c0_8 = arith.constant 0 : index
    %c0_9 = arith.constant 0 : index
    %c0_10 = arith.constant 0 : index
    %29 = vector.load %arg3[%c0_8, %c0_9, %c0_10] : memref<1x64x128xf32, #tpu.memory_space<vmem>>, vector<1x64x128xf32>
    %30 = vector.shape_cast %29 : vector<1x64x128xf32> to vector<64x128xf32>
    %31 = vector.shape_cast %28 : vector<64x128xf32> to vector<1x64x128xf32>
    tpu.vector_store %arg3[%c0_8, %c0_9, %c0_10], %31 {strides = array<i32>} : memref<1x64x128xf32, #tpu.memory_space<vmem>>, vector<1x64x128xf32>,
    return
  }
  func.func @transform_0(%arg0: i32) -> i32 {
    %c0_i32 = arith.constant 0 : i32
    %c0_i32_0 = arith.constant 0 : i32
    return %c0_i32 : i32
  }
  func.func @transform_1(%arg0: i32) -> (i32, i32, i32) {
    %c0_i32 = arith.constant 0 : i32
    %c0_i32_0 = arith.constant 0 : i32
    %c0_i32_1 = arith.constant 0 : i32
    return %c0_i32, %arg0, %c0_i32_0 : i32, i32, i32
  }
  func.func @transform_2(%arg0: i32) -> (i32, i32, i32) {
    %c0_i32 = arith.constant 0 : i32
    %c0_i32_0 = arith.constant 0 : i32
    %c0_i32_1 = arith.constant 0 : i32
    return %c0_i32, %arg0, %c0_i32_0 : i32, i32, i32
  }
}

</mosaic_0001>

<llo_original>
// kernel: _translate_channel0.1
$region0: #{_translate_channel0.1}
  #allocation0 [shape = 'u32[]', space=smem, size = 0x4, offset = 0x4, fixed_abs, tag = 'smem constant byte address 0x4 - core index']
  #allocation1 [shape = 'u32[72,128]{1,0:T(1,128)}', space=vmem, size = 0x9000, scoped, tag = 'internal scratch']
  #allocation2 [shape = 's32[1]{0:T(128)S(6)}', space=smem, size = 0x200, scoped, tag = 'scoped memory for _translate_channel0.1']
  %s0 = inlined_call_operand.<no memory space> [shape: s32[1], index: 0, kind: input, shape index: {}]
  %s1 = inlined_call_operand.hbm [shape: f32[4,64,128], index: 1, kind: input, shape index: {}, may-alias: {1,2}]
  %s2 = inlined_call_operand.hbm [shape: f32[4,64,128], index: 2, kind: output, shape index: {}, may-alias: {1,2}]
  %s3 = sld [smem:[#allocation0]]
  $region22: #{_translate_channel0.1} parent=0
    _
  %s5 = ssub.s32 1, %s3
  %s6 = scalar_select 0, %s5, %s3
  %7 = sst [smem:[#allocation2]] %s0
  $region1: #{_translate_channel0.1} parent=0
    #allocation3 [shape = 'u8[32768]{0}', space=vmem, size = 0x8000, scoped, tag = 'input window, operand 1, single buffered']
    #allocation4 [shape = 's32[1]{0}', space=sflag, size = 0x4, scoped, tag = 'scoped memory for _translate_channel0.1']
    #allocation5 [shape = 's32[1]{0}', space=sflag, size = 0x4, scoped, tag = 'scoped memory for _translate_channel0.1']
    #allocation6 [shape = 'u8[32768]{0}', space=vmem, size = 0x8000, scoped, tag = 'output window, operand 0, single buffered']
    %8 = vsyncpa [#allocation4], 0
    %9 = vsyncpa [#allocation5], 0
    // Predicated region
    $region2: #{_translate_channel0.1} parent=1 // pred_check
      _
    $region3: #{_translate_channel0.1} parent=1 // pred_check_branch
      %11 = sbr.rel (0) target = $region5
    $region4: #{_translate_channel0.1} parent=1 // pred_region
      _
    $region5: #{_translate_channel0.1} parent=1 // pred_fallthru
      _
    // Predicated region
    $region6: #{_translate_channel0.1} parent=1 // pred_check
      _
    $region7: #{_translate_channel0.1} parent=1 // pred_check_branch
      %13 = sbr.rel (0) target = $region9
    $region8: #{_translate_channel0.1} parent=1 // pred_region
      %15 = vsyncadd [#allocation4], 0
      %s16 = sshll.u32 %s1, 4
      %s17 = int_to_ptr.hbm [resolvable:$true] %s16
      %s18 = sshll.u32 [#allocation3], 4
      %s19 = int_to_ptr.vmem [resolvable:$true] %s18
      %24 = dma.hbm_to_vmem [thread:$0]  %s17, 1024, %s19, [#allocation4], 128, 128, 8
    $region9: #{_translate_channel0.1} parent=1 // pred_fallthru
      _
    // Predicated region
    $region10: #{_translate_channel0.1} parent=1 // pred_check
      _
    $region11: #{_translate_channel0.1} parent=1 // pred_check_branch
      %26 = sbr.rel (0) target = $region13
    $region12: #{_translate_channel0.1} parent=1 // pred_region
      %28 = dma.done [#allocation4], 1024
    $region13: #{_translate_channel0.1} parent=1 // pred_fallthru
      _
    %s29 = sld [smem:[#allocation2]]
    %v30 = vld [vmem:[#allocation3] sm:$0xff]
    %v31 = vld [vmem:[#allocation3 + $0x8] sm:$0xff]
    %v32 = vld [vmem:[#allocation3 + $0x10] sm:$0xff]
    %v33 = vld [vmem:[#allocation3 + $0x18] sm:$0xff]
    %v34 = vld [vmem:[#allocation3 + $0x20] sm:$0xff]
    %v35 = vld [vmem:[#allocation3 + $0x28] sm:$0xff]
    %v36 = vld [vmem:[#allocation3 + $0x30] sm:$0xff]
    %v37 = vld [vmem:[#allocation3 + $0x38] sm:$0xff]
    %p38 = scmp.lt.s32.totalorder %s29, 0
    %s39 = ssub.s32 0, %s29
    %s40 = scalar_select %p38, %s39, %s29
    %s41 = sand.u32 %s40, 127
    %s42 = ssub.s32 0, %s41
    %s43 = scalar_select %p38, %s42, %s41
    %p44 = scmp.ne.s32.totalorder %s43, 0
    %p45 = scmp.lt.s32.totalorder %s43, 0
    %p46 = pnand %p45, %p44
    %p47 = pneg %p46
    %s48 = sadd.s32 %s43, 128
    %s49 = scalar_select %p47, %s48, %s43
    %s50 = sand.u32 %s49, 127
    %s51 = sand.u32 %s50, 127
    %52 = vrot.lane.b32.xlu0 %v30, %s51
    %v53 = vpop.permute.xlu0 %52
    %54 = vrot.lane.b32.xlu0 %v31, %s51
    %v55 = vpop.permute.xlu0 %54
    %56 = vrot.lane.b32.xlu0 %v32, %s51
    %v57 = vpop.permute.xlu0 %56
    %58 = vrot.lane.b32.xlu0 %v33, %s51
    %v59 = vpop.permute.xlu0 %58
    %60 = vrot.lane.b32.xlu0 %v34, %s51
    %v61 = vpop.permute.xlu0 %60
    %62 = vrot.lane.b32.xlu0 %v35, %s51
    %v63 = vpop.permute.xlu0 %62
    %64 = vrot.lane.b32.xlu0 %v36, %s51
    %v65 = vpop.permute.xlu0 %64
    %66 = vrot.lane.b32.xlu0 %v37, %s51
    %v67 = vpop.permute.xlu0 %66
    %v68 = vlaneseq
    %v69 = vand.u32 %v68, 127
    %v70 = vstv %s29
    %v71 = vsub.s32 %v69, %v70
    %vm72 = vcmp.lt.s32.totalorder %v69, 64
    %vm73 = vcmp.ge.s32.totalorder %v71, 0
    %vm74 = vmand %vm72, %vm73
    %vm75 = vcmp.lt.s32.totalorder %v71, 64
    %vm76 = vmand %vm74, %vm75
    %v77 = vsel %vm76, 1, 0
    %vm78 = vcmp.eq.s32.totalorder %v77, 1
    %v79 = vsel %vm78, %v53, 0.0
    %v80 = vsel %vm78, %v55, 0.0
    %v81 = vsel %vm78, %v57, 0.0
    %v82 = vsel %vm78, %v59, 0.0
    %v83 = vsel %vm78, %v61, 0.0
    %v84 = vsel %vm78, %v63, 0.0
    %v85 = vsel %vm78, %v65, 0.0
    %v86 = vsel %vm78, %v67, 0.0
    %87 = vst [vmem:[#allocation6] sm:$0xff] %v79
    %88 = vst [vmem:[#allocation6 + $0x8] sm:$0xff] %v80
    %89 = vst [vmem:[#allocation6 + $0x10] sm:$0xff] %v81
    %90 = vst [vmem:[#allocation6 + $0x18] sm:$0xff] %v82
    %91 = vst [vmem:[#allocation6 + $0x20] sm:$0xff] %v83
    %92 = vst [vmem:[#allocation6 + $0x28] sm:$0xff] %v84
    %93 = vst [vmem:[#allocation6 + $0x30] sm:$0xff] %v85
    %94 = vst [vmem:[#allocation6 + $0x38] sm:$0xff] %v86
    // Predicated region
    $region14: #{_translate_channel0.1} parent=1 // pred_check
      _
    $region15: #{_translate_channel0.1} parent=1 // pred_check_branch
      %96 = sbr.rel (0) target = $region17
    $region16: #{_translate_channel0.1} parent=1 // pred_region
      %98 = vsyncadd [#allocation5], 0
      %s99 = sshll.u32 [#allocation6], 4
      %s100 = int_to_ptr.vmem [resolvable:$true] %s99
      %s101 = sshll.u32 %s2, 4
      %s102 = int_to_ptr.hbm [resolvable:$true] %s101
      %107 = dma.vmem_to_hbm [thread:$0]  %s100, 1024, %s102, [#allocation5], 128, 128, 8
    $region17: #{_translate_channel0.1} parent=1 // pred_fallthru
      _
    // Predicated region
    $region18: #{_translate_channel0.1} parent=1 // pred_check
      _
    $region19: #{_translate_channel0.1} parent=1 // pred_check_branch
      %109 = sbr.rel (0) target = $region21
    $region20: #{_translate_channel0.1} parent=1 // pred_region
      %111 = dma.done [#allocation5], 1024
    $region21: #{_translate_channel0.1} parent=1 // pred_fallthru
      _
    %112 = vsyncpa [#allocation4], 1
    %113 = vsyncpa [#allocation5], 1

</llo_original>
